<compile_context>
chip_gen: v6e
topology: v6e:2x2x1
jax: 0.10.0
libtpu: 0.0.40
codegen_flags: <defaults>
</compile_context>

<pallas_src>
import functools

import jax
import jax.numpy as jnp
import numpy as np
from jax.experimental import pallas as pl
from jax.experimental.pallas import tpu as pltpu

NUM_CLASSES = 12
IGNORE_INDEX = 255


def _body_loss_kernel(logits_ref, label_ref, lw_ref, sketch_ref, out_ref,
                      sum_acc, cnt_acc, *, num_voxels, tile_v, strip,
                      tiles_per_chunk, has_partial, has_empty):
    chunk = pl.program_id(1)
    i = pl.program_id(2)
    tile_idx = chunk * tiles_per_chunk + i
    tile_start = tile_idx * tile_v
    n_strips = tile_v // strip

    @pl.when(i == 0)
    def _init():
        sum_acc[...] = jnp.zeros_like(sum_acc)
        cnt_acc[...] = jnp.zeros_like(cnt_acc)

    def _accumulate(lane_masked):
        # Strip-wise compute: fixed (C, strip) working set stays in vregs while
        # the DMA tile (tile_v lanes) grows independently.  Strips are unrolled
        # statically with static ref slices (zero index math); the running
        # (1, strip) sums live in vregs and the VMEM scratch accumulators are
        # touched only once per tile.
        s_run = jnp.zeros((1, strip), jnp.float32)
        c_run = jnp.zeros((1, strip), jnp.float32)
        for j in range(n_strips):
            sl = slice(j * strip, (j + 1) * strip)
            x = logits_ref[0, :, sl].astype(jnp.float32)        # (C, strip)
            lab = label_ref[0, :, sl].astype(jnp.int32)         # (1, strip)
            lw = lw_ref[0, :, sl].astype(jnp.int32)             # (1, strip)
            sk = sketch_ref[0, :, sl].astype(jnp.int32)         # (1, strip)

            selected = (sk == 0) & (lw != 0)                    # "edges" mask
            if lane_masked:
                lane = jax.lax.broadcasted_iota(jnp.int32, (1, strip), 1)
                in_range = (tile_start + j * strip + lane) < num_voxels
                selected = selected & in_range
                # Zero uninitialized (out-of-range) logits so exp/log stay
                # finite; no reliance on select-masking NaNs.
                x = jnp.where(in_range, x, 0.0)

            # Per-voxel log-softmax, reducing over the class (sublane) axis.
            row_max = jnp.max(x, axis=0, keepdims=True)                      # (1, strip)
            shifted = x - row_max                                            # (C, strip)
            lse = jnp.log(jnp.sum(jnp.exp(shifted), axis=0, keepdims=True))  # (1, strip)
            cls = jax.lax.broadcasted_iota(jnp.int32, x.shape, 0)            # (C, strip)
            tgt = jnp.sum(jnp.where(cls == lab, shifted, 0.0),
                          axis=0, keepdims=True)                             # (1, strip)
            ce = lse - tgt                                                   # (1, strip)

            valid = selected & (lab != IGNORE_INDEX)            # numerator mask
            s_run = s_run + jnp.where(valid, ce, 0.0)
            c_run = c_run + jnp.where(selected, 1.0, 0.0)

        sum_acc[...] += s_run
        cnt_acc[...] += c_run

    if has_partial or has_empty:
        # Fast path for full tiles (no lane masking); masked path only for the
        # partial last tile; over-the-end tiles (chunk rounding) are skipped.
        is_full = (tile_start + tile_v) <= num_voxels

        @pl.when(is_full)
        def _full_tile():
            _accumulate(False)

        if has_partial:
            @pl.when(jnp.logical_and(tile_start < num_voxels,
                                     jnp.logical_not(is_full)))
            def _partial_tile():
                _accumulate(True)
    else:
        _accumulate(False)

    @pl.when(i == pl.num_programs(2) - 1)
    def _finalize():
        total_sum = jnp.sum(sum_acc[...])
        total_cnt = jnp.sum(cnt_acc[...])
        out_lane = jax.lax.broadcasted_iota(jnp.int32, out_ref.shape, 2)
        out_ref[...] = jnp.where(out_lane == 0, total_sum,
                                 jnp.where(out_lane == 1, total_cnt, 0.0))


@functools.partial(jax.jit, static_argnames=("tile_v",))
def body_loss_cri(pred_body, label, label_weight, sketch_gt, *, tile_v=8192):
    """Masked mean cross-entropy over body voxels (edges = ~sketch & weight)."""
    n = pred_body.shape[0]
    c = pred_body.shape[1]
    vox = int(np.prod(pred_body.shape[2:]))

    # Free reshape of the native layout: classes on sublanes, voxels lane-dense.
    # bf16 pred_body is accepted as-is (upcast happens per-strip in-kernel).
    logits = pred_body.reshape(n, c, vox)

    def _prep_aux(x, *, allow_signed_8bit=True):
        x = x.reshape(n, 1, vox)
        dt = x.dtype
        if jnp.issubdtype(dt, jnp.integer) and dt.itemsize <= 4:
            if dt == jnp.int8 and not allow_signed_8bit:
                # signed int8 would wrap IGNORE_INDEX=255 to -1 for the label.
                return x.astype(jnp.int32)
            return x          # narrow int dtypes pass straight through (no cast pass)
        return x.astype(jnp.int32)

    lab = _prep_aux(label, allow_signed_8bit=False)   # label must keep 255 intact
    lw = _prep_aux(label_weight)
    sk = _prep_aux(sketch_gt)

    def _round_up(a, b):
        return ((a + b - 1) // b) * b

    tv = min(_round_up(tile_v, 128), _round_up(vox, 128))
    # Fixed compute strip inside a tile (largest of 512/256/128 dividing tv).
    if tv % 512 == 0:
        strip = 512
    elif tv % 256 == 0:
        strip = 256
    else:
        strip = 128

    tiles_per_batch = (vox + tv - 1) // tv
    # Megacore (v7x) coverage: if the batch axis alone cannot balance the two
    # TensorCores (N==1 or odd N), split the voxel axis into a second
    # "parallel" chunk axis.  Harmless on single-TC v5e/v6e.
    n_chunks = 2 if (n % 2 == 1 and tiles_per_batch >= 2) else 1
    tiles_per_chunk = (tiles_per_batch + n_chunks - 1) // n_chunks
    has_partial = (vox % tv) != 0
    has_empty = (n_chunks * tiles_per_chunk) != tiles_per_batch

    grid = (n, n_chunks, tiles_per_chunk)

    def _vox_block(ck, i):
        t = ck * tiles_per_chunk + i
        if has_empty:
            # Over-the-end tiles (from chunk rounding) re-read the last valid
            # block; the kernel skips them via pl.when, so no double counting.
            t = jnp.minimum(t, tiles_per_batch - 1)
        return t

    kernel = functools.partial(
        _body_loss_kernel, num_voxels=vox, tile_v=tv, strip=strip,
        tiles_per_chunk=tiles_per_chunk, has_partial=has_partial,
        has_empty=has_empty)

    # VMEM use at tv=8192 with f32 logits: ~0.8 MiB double-buffered logits plus
    # <0.3 MiB aux/scratch — far below the scoped default on v5e/v6e/v7x, so no
    # vmem_limit_bytes override is needed even when sweeping tile_v to 16384.
    partials = pl.pallas_call(
        kernel,
        out_shape=jax.ShapeDtypeStruct((n * n_chunks, 1, 128), jnp.float32),
        grid_spec=pltpu.PrefetchScalarGridSpec(
            num_scalar_prefetch=0,
            grid=grid,
            in_specs=[
                pl.BlockSpec((1, c, tv), lambda b, ck, i: (b, 0, _vox_block(ck, i))),
                pl.BlockSpec((1, 1, tv), lambda b, ck, i: (b, 0, _vox_block(ck, i))),
                pl.BlockSpec((1, 1, tv), lambda b, ck, i: (b, 0, _vox_block(ck, i))),
                pl.BlockSpec((1, 1, tv), lambda b, ck, i: (b, 0, _vox_block(ck, i))),
            ],
            out_specs=pl.BlockSpec((1, 1, 128),
                                   lambda b, ck, i: (b * n_chunks + ck, 0, 0)),
            scratch_shapes=[
                pltpu.VMEM((1, strip), jnp.float32),   # per-lane running loss sum
                pltpu.VMEM((1, strip), jnp.float32),   # per-lane running select count
            ],
        ),
        compiler_params=pltpu.CompilerParams(
            dimension_semantics=("parallel", "parallel", "arbitrary"),
        ),
    )(logits, lab, lw, sk)

    total_sum = jnp.sum(partials[:, 0, 0])
    total_cnt = jnp.sum(partials[:, 0, 1])
    # Matches torch.mean over an empty selection (NaN) when total_cnt == 0.
    return total_sum / total_cnt


def _reference(pred_body, label, label_weight, sketch_gt):
    """Pure-JAX mirror of the PyTorch forward (for verification)."""
    n = label_weight.shape[0]
    c = pred_body.shape[1]
    sketch_flat = sketch_gt.reshape(n, -1).astype(jnp.int32)
    not_sketch = (sketch_flat == 0).astype(jnp.int32)
    edges = (not_sketch & label_weight.reshape(n, -1).astype(jnp.int32)).reshape(-1)
    logits = jnp.moveaxis(pred_body.reshape(n, c, -1), 1, -1).reshape(-1, c)
    logits = logits.astype(jnp.float32)
    lab = label.reshape(-1).astype(jnp.int32)
    lse = jax.nn.logsumexp(logits, axis=-1)
    lab_safe = jnp.where(lab == IGNORE_INDEX, 0, lab)
    tgt = jnp.take_along_axis(logits, lab_safe[:, None], axis=-1)[:, 0]
    ce = lse - tgt
    sel = (edges != 0).astype(jnp.float32)
    valid = sel * (lab != IGNORE_INDEX).astype(jnp.float32)
    return jnp.sum(valid * ce) / jnp.sum(sel)


if __name__ == "__main__":
    key = jax.random.PRNGKey(0)

    def _make_inputs(k, n, d, h, w):
        k1, k2, k3, k4, k5 = jax.random.split(k, 5)
        pred_body = jax.random.normal(k1, (n, NUM_CLASSES, d, h, w), dtype=jnp.float32)
        label = jax.random.randint(k2, (n, d, h, w), 0, NUM_CLASSES, dtype=jnp.int32)
        label = jnp.where(jax.random.uniform(k3, (n, d, h, w)) < 0.1, IGNORE_INDEX, label)
        label_weight = jax.random.bernoulli(k4, 0.7, (n, d * h * w)).astype(jnp.int32)
        sketch_gt = jax.random.bernoulli(k5, 0.4, (n, d, h, w)).astype(jnp.int32)
        return pred_body, label, label_weight, sketch_gt

    k_a, k_b = jax.random.split(key)

    # Case 1: N=2, C=12, 4x8x8 voxels — single full tile per batch element.
    args1 = _make_inputs(k_a, 2, 4, 8, 8)
    loss1 = body_loss_cri(*args1)
    jax.block_until_ready(loss1)
    np.testing.assert_allclose(np.asarray(loss1), np.asarray(_reference(*args1)),
                               rtol=2e-5, atol=2e-5)

    # Case 2: odd batch + vox % tile != 0 — exercises the partial-tile lane mask,
    # the megacore voxel-chunk split and the over-the-end tile skip.
    args2 = _make_inputs(k_b, 3, 4, 9, 9)
    loss2 = body_loss_cri(*args2, tile_v=128)
    jax.block_until_ready(loss2)
    np.testing.assert_allclose(np.asarray(loss2), np.asarray(_reference(*args2)),
                               rtol=2e-5, atol=2e-5)

    print("KERNEL_OK")
</pallas_src>

<mosaic_0001>
module attributes {stable_mosaic.version = 11 : i64} {
  func.func @_body_loss_kernel(%arg0: i32, %arg1: i32, %arg2: i32, %arg3: memref<1x12x256xf32, #tpu.memory_space<vmem>>, %arg4: memref<1x1x256xi32, #tpu.memory_space<vmem>>, %arg5: memref<1x1x256xi32, #tpu.memory_space<vmem>>, %arg6: memref<1x1x256xi32, #tpu.memory_space<vmem>>, %arg7: memref<1x1x128xf32, #tpu.memory_space<vmem>>, %arg8: memref<1x256xf32, #tpu.memory_space<vmem>>, %arg9: memref<1x256xf32, #tpu.memory_space<vmem>>) attributes {dimension_semantics = [#tpu.dimension_semantics<parallel>, #tpu.dimension_semantics<parallel>, #tpu.dimension_semantics<arbitrary>], iteration_bounds = array<i64: 2, 1, 1>, scalar_prefetch = 0 : i64, scratch_operands = 2 : i64, tpu.core_type = #tpu.core_type<tc>, window_params = [{transform_indices = @transform_0, window_bounds = array<i64: 1, 12, 256>}, {transform_indices = @transform_1, window_bounds = array<i64: 1, 1, 256>}, {transform_indices = @transform_2, window_bounds = array<i64: 1, 1, 256>}, {transform_indices = @transform_3, window_bounds = array<i64: 1, 1, 256>}, {transform_indices = @transform_4, window_bounds = array<i64: 1, 1, 128>}]} {
    %c0_i32 = arith.constant 0 : i32
    %0 = arith.cmpi eq, %arg2, %c0_i32 : i32
    %1 = arith.extui %0 : i1 to i32
    %c0_i32_0 = arith.constant 0 : i32
    %2 = arith.cmpi ne, %1, %c0_i32_0 : i32
    scf.if %2 {
      %cst_32 = arith.constant 0.000000e+00 : f32
      %53 = vector.broadcast %cst_32 : f32 to vector<1x256xf32>
      %c0_33 = arith.constant 0 : index
      %c0_34 = arith.constant 0 : index
      %54 = vector.load %arg8[%c0_33, %c0_34] : memref<1x256xf32, #tpu.memory_space<vmem>>, vector<1x256xf32>
      tpu.vector_store %arg8[%c0_33, %c0_34], %53 {strides = array<i32>} : memref<1x256xf32, #tpu.memory_space<vmem>>, vector<1x256xf32>,
      %cst_35 = arith.constant 0.000000e+00 : f32
      %55 = vector.broadcast %cst_35 : f32 to vector<1x256xf32>
      %c0_36 = arith.constant 0 : index
      %c0_37 = arith.constant 0 : index
      %56 = vector.load %arg9[%c0_36, %c0_37] : memref<1x256xf32, #tpu.memory_space<vmem>>, vector<1x256xf32>
      tpu.vector_store %arg9[%c0_36, %c0_37], %55 {strides = array<i32>} : memref<1x256xf32, #tpu.memory_space<vmem>>, vector<1x256xf32>,
    } else {
    }
    %cst = arith.constant 0.000000e+00 : f32
    %3 = vector.broadcast %cst : f32 to vector<1x256xf32>
    %cst_1 = arith.constant 0.000000e+00 : f32
    %4 = vector.broadcast %cst_1 : f32 to vector<1x256xf32>
    %c0 = arith.constant 0 : index
    %c0_2 = arith.constant 0 : index
    %c0_3 = arith.constant 0 : index
    %5 = vector.load %arg3[%c0, %c0_2, %c0_3] : memref<1x12x256xf32, #tpu.memory_space<vmem>>, vector<1x12x256xf32>
    %6 = vector.shape_cast %5 : vector<1x12x256xf32> to vector<12x256xf32>
    %c0_4 = arith.constant 0 : index
    %c0_5 = arith.constant 0 : index
    %c0_6 = arith.constant 0 : index
    %7 = vector.load %arg4[%c0_4, %c0_5, %c0_6] : memref<1x1x256xi32, #tpu.memory_space<vmem>>, vector<1x1x256xi32>
    %8 = vector.shape_cast %7 : vector<1x1x256xi32> to vector<1x256xi32>
    %c0_7 = arith.constant 0 : index
    %c0_8 = arith.constant 0 : index
    %c0_9 = arith.constant 0 : index
    %9 = vector.load %arg5[%c0_7, %c0_8, %c0_9] : memref<1x1x256xi32, #tpu.memory_space<vmem>>, vector<1x1x256xi32>
    %10 = vector.shape_cast %9 : vector<1x1x256xi32> to vector<1x256xi32>
    %c0_10 = arith.constant 0 : index
    %c0_11 = arith.constant 0 : index
    %c0_12 = arith.constant 0 : index
    %11 = vector.load %arg6[%c0_10, %c0_11, %c0_12] : memref<1x1x256xi32, #tpu.memory_space<vmem>>, vector<1x1x256xi32>
    %12 = vector.shape_cast %11 : vector<1x1x256xi32> to vector<1x256xi32>
    %c0_i32_13 = arith.constant 0 : i32
    %13 = vector.broadcast %c0_i32_13 : i32 to vector<1x256xi32>
    %14 = arith.cmpi eq, %12, %13 : vector<1x256xi32>
    %c0_i32_14 = arith.constant 0 : i32
    %15 = vector.broadcast %c0_i32_14 : i32 to vector<1x256xi32>
    %16 = arith.cmpi ne, %10, %15 : vector<1x256xi32>
    %17 = arith.andi %14, %16 : vector<1x256xi1>
    %cst_15 = arith.constant dense<0xFF800000> : vector<256xf32>
    %18 = vector.multi_reduction <maximumf>, %6, %cst_15 [0] : vector<12x256xf32> to vector<256xf32>
    %19 = vector.shape_cast %18 : vector<256xf32> to vector<1x256xf32>
    %20 = vector.broadcast %19 : vector<1x256xf32> to vector<12x256xf32>
    %21 = arith.subf %6, %20 : vector<12x256xf32>
    %22 = math.exp %21 : vector<12x256xf32>
    %cst_16 = arith.constant dense<0.000000e+00> : vector<256xf32>
    %23 = vector.multi_reduction <add>, %22, %cst_16 [0] : vector<12x256xf32> to vector<256xf32>
    %24 = vector.shape_cast %23 : vector<256xf32> to vector<1x256xf32>
    %25 = math.log %24 : vector<1x256xf32>
    %26 = tpu.iota {dimensions = array<i32: 0>} : vector<12x256xi32>
    %27 = vector.broadcast %8 : vector<1x256xi32> to vector<12x256xi32>
    %28 = arith.cmpi eq, %26, %27 : vector<12x256xi32>
    %cst_17 = arith.constant 0.000000e+00 : f32
    %29 = vector.broadcast %cst_17 : f32 to vector<12x256xf32>
    %30 = arith.select %28, %21, %29 : vector<12x256xi1>, vector<12x256xf32>
    %cst_18 = arith.constant dense<0.000000e+00> : vector<256xf32>
    %31 = vector.multi_reduction <add>, %30, %cst_18 [0] : vector<12x256xf32> to vector<256xf32>
    %32 = vector.shape_cast %31 : vector<256xf32> to vector<1x256xf32>
    %33 = arith.subf %25, %32 : vector<1x256xf32>
    %c255_i32 = arith.constant 255 : i32
    %34 = vector.broadcast %c255_i32 : i32 to vector<1x256xi32>
    %35 = arith.cmpi ne, %8, %34 : vector<1x256xi32>
    %36 = arith.andi %17, %35 : vector<1x256xi1>
    %cst_19 = arith.constant 0.000000e+00 : f32
    %37 = vector.broadcast %cst_19 : f32 to vector<1x256xf32>
    %38 = arith.select %36, %33, %37 : vector<1x256xi1>, vector<1x256xf32>
    %39 = arith.addf %3, %38 : vector<1x256xf32>
    %cst_20 = arith.constant 1.000000e+00 : f32
    %cst_21 = arith.constant 0.000000e+00 : f32
    %40 = vector.broadcast %cst_20 : f32 to vector<1x256xf32>
    %41 = vector.broadcast %cst_21 : f32 to vector<1x256xf32>
    %42 = arith.select %17, %40, %41 : vector<1x256xi1>, vector<1x256xf32>
    %43 = arith.addf %4, %42 : vector<1x256xf32>
    %c0_22 = arith.constant 0 : index
    %c0_23 = arith.constant 0 : index
    %44 = vector.load %arg8[%c0_22, %c0_23] : memref<1x256xf32, #tpu.memory_space<vmem>>, vector<1x256xf32>
    %45 = arith.addf %44, %39 : vector<1x256xf32>
    %c0_24 = arith.constant 0 : index
    %c0_25 = arith.constant 0 : index
    %46 = vector.load %arg8[%c0_24, %c0_25] : memref<1x256xf32, #tpu.memory_space<vmem>>, vector<1x256xf32>
    tpu.vector_store %arg8[%c0_24, %c0_25], %45 {strides = array<i32>} : memref<1x256xf32, #tpu.memory_space<vmem>>, vector<1x256xf32>,
    %c0_26 = arith.constant 0 : index
    %c0_27 = arith.constant 0 : index
    %47 = vector.load %arg9[%c0_26, %c0_27] : memref<1x256xf32, #tpu.memory_space<vmem>>, vector<1x256xf32>
    %48 = arith.addf %47, %43 : vector<1x256xf32>
    %c0_28 = arith.constant 0 : index
    %c0_29 = arith.constant 0 : index
    %49 = vector.load %arg9[%c0_28, %c0_29] : memref<1x256xf32, #tpu.memory_space<vmem>>, vector<1x256xf32>
    tpu.vector_store %arg9[%c0_28, %c0_29], %48 {strides = array<i32>} : memref<1x256xf32, #tpu.memory_space<vmem>>, vector<1x256xf32>,
    %c0_i32_30 = arith.constant 0 : i32
    %50 = arith.cmpi eq, %arg2, %c0_i32_30 : i32
    %51 = arith.extui %50 : i1 to i32
    %c0_i32_31 = arith.constant 0 : i32
    %52 = arith.cmpi ne, %51, %c0_i32_31 : i32
    scf.if %52 {
      %c0_32 = arith.constant 0 : index
      %c0_33 = arith.constant 0 : index
      %53 = vector.load %arg8[%c0_32, %c0_33] : memref<1x256xf32, #tpu.memory_space<vmem>>, vector<1x256xf32>
      %54 = vector.shape_cast %53 : vector<1x256xf32> to vector<1x1x256xf32>
      %cst_34 = arith.constant dense<0.000000e+00> : vector<1xf32>
      %55 = vector.multi_reduction <add>, %54, %cst_34 [1, 2] : vector<1x1x256xf32> to vector<1xf32>
      %56 = vector.shape_cast %55 : vector<1xf32> to vector<1x1x1xf32>
      %57 = vector.extract %56[0, 0, 0] : f32 from vector<1x1x1xf32>
      %c0_35 = arith.constant 0 : index
      %c0_36 = arith.constant 0 : index
      %58 = vector.load %arg9[%c0_35, %c0_36] : memref<1x256xf32, #tpu.memory_space<vmem>>, vector<1x256xf32>
      %59 = vector.shape_cast %58 : vector<1x256xf32> to vector<1x1x256xf32>
      %cst_37 = arith.constant dense<0.000000e+00> : vector<1xf32>
      %60 = vector.multi_reduction <add>, %59, %cst_37 [1, 2] : vector<1x1x256xf32> to vector<1xf32>
      %61 = vector.shape_cast %60 : vector<1xf32> to vector<1x1x1xf32>
      %62 = vector.extract %61[0, 0, 0] : f32 from vector<1x1x1xf32>
      %63 = tpu.iota {dimensions = array<i32: 2>} : vector<1x1x128xi32>
      %c0_i32_38 = arith.constant 0 : i32
      %64 = vector.broadcast %c0_i32_38 : i32 to vector<1x1x128xi32>
      %65 = arith.cmpi eq, %63, %64 : vector<1x1x128xi32>
      %c1_i32 = arith.constant 1 : i32
      %66 = vector.broadcast %c1_i32 : i32 to vector<1x1x128xi32>
      %67 = arith.cmpi eq, %63, %66 : vector<1x1x128xi32>
      %cst_39 = arith.constant 0.000000e+00 : f32
      %68 = vector.broadcast %62 : f32 to vector<1x1x128xf32>
      %69 = vector.broadcast %cst_39 : f32 to vector<1x1x128xf32>
      %70 = arith.select %67, %68, %69 : vector<1x1x128xi1>, vector<1x1x128xf32>
      %71 = vector.broadcast %57 : f32 to vector<1x1x128xf32>
      %72 = arith.select %65, %71, %70 : vector<1x1x128xi1>, vector<1x1x128xf32>
      %c0_40 = arith.constant 0 : index
      %c0_41 = arith.constant 0 : index
      %c0_42 = arith.constant 0 : index
      %73 = vector.load %arg7[%c0_40, %c0_41, %c0_42] : memref<1x1x128xf32, #tpu.memory_space<vmem>>, vector<1x1x128xf32>
      tpu.vector_store %arg7[%c0_40, %c0_41, %c0_42], %72 {strides = array<i32>} : memref<1x1x128xf32, #tpu.memory_space<vmem>>, vector<1x1x128xf32>,
    } else {
    }
    return
  }
  func.func @transform_0(%arg0: i32, %arg1: i32, %arg2: i32) -> (i32, i32, i32) {
    %c1_i32 = arith.constant 1 : i32
    %0 = arith.muli %arg1, %c1_i32 : i32
    %1 = arith.addi %0, %arg2 : i32
    %c0_i32 = arith.constant 0 : i32
    %c0_i32_0 = arith.constant 0 : i32
    return %arg0, %c0_i32, %1 : i32, i32, i32
  }
  func.func @transform_1(%arg0: i32, %arg1: i32, %arg2: i32) -> (i32, i32, i32) {
    %c1_i32 = arith.constant 1 : i32
    %0 = arith.muli %arg1, %c1_i32 : i32
    %1 = arith.addi %0, %arg2 : i32
    %c0_i32 = arith.constant 0 : i32
    %c0_i32_0 = arith.constant 0 : i32
    return %arg0, %c0_i32, %1 : i32, i32, i32
  }
  func.func @transform_2(%arg0: i32, %arg1: i32, %arg2: i32) -> (i32, i32, i32) {
    %c1_i32 = arith.constant 1 : i32
    %0 = arith.muli %arg1, %c1_i32 : i32
    %1 = arith.addi %0, %arg2 : i32
    %c0_i32 = arith.constant 0 : i32
    %c0_i32_0 = arith.constant 0 : i32
    return %arg0, %c0_i32, %1 : i32, i32, i32
  }
  func.func @transform_3(%arg0: i32, %arg1: i32, %arg2: i32) -> (i32, i32, i32) {
    %c1_i32 = arith.constant 1 : i32
    %0 = arith.muli %arg1, %c1_i32 : i32
    %1 = arith.addi %0, %arg2 : i32
    %c0_i32 = arith.constant 0 : i32
    %c0_i32_0 = arith.constant 0 : i32
    return %arg0, %c0_i32, %1 : i32, i32, i32
  }
  func.func @transform_4(%arg0: i32, %arg1: i32, %arg2: i32) -> (i32, i32, i32) {
    %c1_i32 = arith.constant 1 : i32
    %0 = arith.muli %arg0, %c1_i32 : i32
    %1 = arith.addi %0, %arg1 : i32
    %c0_i32 = arith.constant 0 : i32
    %c0_i32_0 = arith.constant 0 : i32
    %c0_i32_1 = arith.constant 0 : i32
    return %1, %c0_i32, %c0_i32_0 : i32, i32, i32
  }
}

</mosaic_0001>

<llo_original>
// kernel: body_loss_cri.1
$region0: #{body_loss_cri.1}
  #allocation0 [shape = 'u32[]', space=smem, size = 0x4, offset = 0x4, fixed_abs, tag = 'smem constant byte address 0x4 - core index']
  #allocation1 [shape = 'u32[144,128]{1,0:T(1,128)}', space=vmem, size = 0x12000, scoped, tag = 'internal scratch']
  #allocation2 [shape = 'f32[1,256]{1,0:T(1,128)}', space=vmem, size = 0x400, scoped, tag = 'scratch operand']
  #allocation3 [shape = 'f32[1,256]{1,0:T(1,128)}', space=vmem, size = 0x400, scoped, tag = 'scratch operand']
  %s0 = inlined_call_operand.vmem [shape: f32[2,12,256], index: 0, kind: input, shape index: {}]
  %s1 = inlined_call_operand.vmem [shape: s32[2,1,256], index: 1, kind: input, shape index: {}]
  %s2 = inlined_call_operand.vmem [shape: s32[2,1,256], index: 2, kind: input, shape index: {}]
  %s3 = inlined_call_operand.vmem [shape: s32[2,1,256], index: 3, kind: input, shape index: {}]
  %s4 = inlined_call_operand.vmem [shape: f32[2,1,128], index: 4, kind: output, shape index: {}]
  %s5 = sld [smem:[#allocation0]]
  $region57: #{body_loss_cri.1} parent=0
    _
  %s7 = ssub.s32 1, %s5
  %s8 = scalar_select 0, %s7, %s5
  loop: start=0, step=1, limit=4
  $region2: #{body_loss_cri.1} parent=0 // loop_pre_header
    _
  $region3: #{body_loss_cri.1} parent=0 // loop_header
    %s10 = sphi 0, %s14
    %p11 = scmp.ge.s32.totalorder %s10, 4
    %s17 = sphi 0, %s36
    %s18 = sphi 0, %s32
    %s19 = sphi 0, %s28
    %s20 = sphi 0, %s17
    %s21 = sphi 0, %s18
    %s22 = sphi 0, %s19
    %s23 = sphi 0, %s20
    %s24 = sphi 0, %s21
    %s25 = sphi 0, %s22
    %s43 = sphi 0, %s45
    %s46 = sphi 0, %s43
    %s47 = sphi 0, %s46
    %s63 = sphi 0, %s47
    %s73 = sphi 0, %s75
    %s76 = sphi 0, %s73
    %s77 = sphi 0, %s76
    %s93 = sphi 0, %s77
    %s103 = sphi 0, %s105
    %s106 = sphi 0, %s103
    %s107 = sphi 0, %s106
    %s123 = sphi 0, %s107
    %s133 = sphi 0, %s135
    %s136 = sphi 0, %s133
    %s137 = sphi 0, %s136
    %s153 = sphi 0, %s137
    %s161 = sphi 0, %s163
    %s164 = sphi 0, %s161
    %s165 = sphi 0, %s164
    %s181 = sphi 0, %s165
  $region4: #{body_loss_cri.1} parent=0 // loop_header_branch
    %13 = sbr.rel (%p11) target = $region8
  $region5: #{body_loss_cri.1} parent=0 // loop_body
    %s15 = ssub.s32 %s10, 1
    %s16 = ssub.s32 %s10, 2
    %s26 = sadd.s32 1, %s19
    %p27 = scmp.ge.s32.totalorder %s26, 1
    %s28 = scalar_select %p27, 0, %s26
    %s29 = sadd.s32 1, %s18
    %s30 = scalar_select %p27, %s29, %s18
    %p31 = scmp.ge.s32.totalorder %s30, 1
    %s32 = scalar_select %p31, 0, %s30
    %s33 = sadd.s32 1, %s17
    %s34 = scalar_select %p31, %s33, %s17
    %p35 = scmp.ge.s32.totalorder %s34, 2
    %s36 = scalar_select %p35, 0, %s34
    %s37 = sadd.s32 %s18, %s19
    %s38 = sadd.s32 %s32, %s28
    %s39 = ssub.s32 %s17, %s36
    %s40 = ssub.s32 %s37, %s38
    %s41 = sor.u32 %s39, %s40
    %p42 = scmp.eq.s32.totalorder %s41, 0
    %s44 = sadd.s32 %s43, 1
    %s45 = scalar_select %p42, %s43, %s44
    %p48 = pneg %p42
    %p49 = scmp.eq.s32.totalorder %s10, 1
    %p50 = por %p48, %p49
    %p51 = scmp.ne.s32.totalorder %s43, %s46
    %p52 = scmp.eq.s32.totalorder %s10, 0
    %p53 = por %p51, %p52
    %p54 = scmp.ne.s32.totalorder %s43, %s46
    %p55 = scmp.eq.s32.totalorder %s15, 1
    %p56 = por %p54, %p55
    %p57 = scmp.ne.s32.totalorder %s46, %s47
    %p58 = scmp.eq.s32.totalorder %s15, 0
    %p59 = por %p57, %p58
    %p60 = scmp.ne.s32.totalorder %s46, %s47
    %p61 = scmp.eq.s32.totalorder %s16, 1
    %p62 = por %p60, %p61
    %p64 = scmp.ne.s32.totalorder %s47, %s63
    %p65 = scmp.eq.s32.totalorder %s16, 0
    %p66 = por %p64, %p65
    %s67 = sadd.s32 %s18, %s19
    %s68 = sadd.s32 %s32, %s28
    %s69 = ssub.s32 %s17, %s36
    %s70 = ssub.s32 %s67, %s68
    %s71 = sor.u32 %s69, %s70
    %p72 = scmp.eq.s32.totalorder %s71, 0
    %s74 = sadd.s32 %s73, 1
    %s75 = scalar_select %p72, %s73, %s74
    %p78 = pneg %p72
    %p79 = scmp.eq.s32.totalorder %s10, 1
    %p80 = por %p78, %p79
    %p81 = scmp.ne.s32.totalorder %s73, %s76
    %p82 = scmp.eq.s32.totalorder %s10, 0
    %p83 = por %p81, %p82
    %p84 = scmp.ne.s32.totalorder %s73, %s76
    %p85 = scmp.eq.s32.totalorder %s15, 1
    %p86 = por %p84, %p85
    %p87 = scmp.ne.s32.totalorder %s76, %s77
    %p88 = scmp.eq.s32.totalorder %s15, 0
    %p89 = por %p87, %p88
    %p90 = scmp.ne.s32.totalorder %s76, %s77
    %p91 = scmp.eq.s32.totalorder %s16, 1
    %p92 = por %p90, %p91
    %p94 = scmp.ne.s32.totalorder %s77, %s93
    %p95 = scmp.eq.s32.totalorder %s16, 0
    %p96 = por %p94, %p95
    %s97 = sadd.s32 %s18, %s19
    %s98 = sadd.s32 %s32, %s28
    %s99 = ssub.s32 %s17, %s36
    %s100 = ssub.s32 %s97, %s98
    %s101 = sor.u32 %s99, %s100
    %p102 = scmp.eq.s32.totalorder %s101, 0
    %s104 = sadd.s32 %s103, 1
    %s105 = scalar_select %p102, %s103, %s104
    %p108 = pneg %p102
    %p109 = scmp.eq.s32.totalorder %s10, 1
    %p110 = por %p108, %p109
    %p111 = scmp.ne.s32.totalorder %s103, %s106
    %p112 = scmp.eq.s32.totalorder %s10, 0
    %p113 = por %p111, %p112
    %p114 = scmp.ne.s32.totalorder %s103, %s106
    %p115 = scmp.eq.s32.totalorder %s15, 1
    %p116 = por %p114, %p115
    %p117 = scmp.ne.s32.totalorder %s106, %s107
    %p118 = scmp.eq.s32.totalorder %s15, 0
    %p119 = por %p117, %p118
    %p120 = scmp.ne.s32.totalorder %s106, %s107
    %p121 = scmp.eq.s32.totalorder %s16, 1
    %p122 = por %p120, %p121
    %p124 = scmp.ne.s32.totalorder %s107, %s123
    %p125 = scmp.eq.s32.totalorder %s16, 0
    %p126 = por %p124, %p125
    %s127 = sadd.s32 %s18, %s19
    %s128 = sadd.s32 %s32, %s28
    %s129 = ssub.s32 %s17, %s36
    %s130 = ssub.s32 %s127, %s128
    %s131 = sor.u32 %s129, %s130
    %p132 = scmp.eq.s32.totalorder %s131, 0
    %s134 = sadd.s32 %s133, 1
    %s135 = scalar_select %p132, %s133, %s134
    %p138 = pneg %p132
    %p139 = scmp.eq.s32.totalorder %s10, 1
    %p140 = por %p138, %p139
    %p141 = scmp.ne.s32.totalorder %s133, %s136
    %p142 = scmp.eq.s32.totalorder %s10, 0
    %p143 = por %p141, %p142
    %p144 = scmp.ne.s32.totalorder %s133, %s136
    %p145 = scmp.eq.s32.totalorder %s15, 1
    %p146 = por %p144, %p145
    %p147 = scmp.ne.s32.totalorder %s136, %s137
    %p148 = scmp.eq.s32.totalorder %s15, 0
    %p149 = por %p147, %p148
    %p150 = scmp.ne.s32.totalorder %s136, %s137
    %p151 = scmp.eq.s32.totalorder %s16, 1
    %p152 = por %p150, %p151
    %p154 = scmp.ne.s32.totalorder %s137, %s153
    %p155 = scmp.eq.s32.totalorder %s16, 0
    %p156 = por %p154, %p155
    %s157 = sadd.s32 %s17, %s18
    %s158 = sadd.s32 %s36, %s32
    %s159 = ssub.s32 %s157, %s158
    %p160 = scmp.eq.s32.totalorder %s159, 0
    %s162 = sadd.s32 %s161, 1
    %s163 = scalar_select %p160, %s161, %s162
    %p166 = pneg %p160
    %p167 = scmp.eq.s32.totalorder %s10, 1
    %p168 = por %p166, %p167
    %p169 = scmp.ne.s32.totalorder %s161, %s164
    %p170 = scmp.eq.s32.totalorder %s10, 0
    %p171 = por %p169, %p170
    %p172 = scmp.ne.s32.totalorder %s161, %s164
    %p173 = scmp.eq.s32.totalorder %s15, 1
    %p174 = por %p172, %p173
    %p175 = scmp.ne.s32.totalorder %s164, %s165
    %p176 = scmp.eq.s32.totalorder %s15, 0
    %p177 = por %p175, %p176
    %p178 = scmp.ne.s32.totalorder %s164, %s165
    %p179 = scmp.eq.s32.totalorder %s16, 1
    %p180 = por %p178, %p179
    %p182 = scmp.ne.s32.totalorder %s165, %s181
    %p183 = scmp.eq.s32.totalorder %s16, 0
    %p184 = por %p182, %p183
    %p185 = scmp.le.s32.totalorder 1, %s10
    %p186 = scmp.lt.s32.totalorder %s10, 3
    %p187 = pnand %p185, %p186
    %p188 = pneg %p187
    // Predicated region
    $region9: #{body_loss_cri.1} parent=5 // pred_check
      _
    $region10: #{body_loss_cri.1} parent=5 // pred_check_branch
      %190 = sbr.rel (%p187) target = $region12
    $region11: #{body_loss_cri.1} parent=5 // pred_region
      %s191 = ssub.s32 %s10, 1
    $region12: #{body_loss_cri.1} parent=5 // pred_fallthru
      _
    %p192 = scmp.lt.s32.totalorder %s10, 2
    // Predicated region
    $region13: #{body_loss_cri.1} parent=5 // pred_check
      %p193 = pneg %p192
    $region14: #{body_loss_cri.1} parent=5 // pred_check_branch
      %195 = sbr.rel (%p193) target = $region16
    $region15: #{body_loss_cri.1} parent=5 // pred_region
      // Predicated region
      $region17: #{body_loss_cri.1} parent=15 // pred_check
        %p196 = pneg %p53
      $region18: #{body_loss_cri.1} parent=15 // pred_check_branch
        %198 = sbr.rel (%p196) target = $region20
      $region19: #{body_loss_cri.1} parent=15 // pred_region
        %s199 = sadd.s32 %s18, %s19
        %s200 = smul.u32 2, %s199
        %p201 = scmp.lt.s32.totalorder %s17, 1
        %s202 = scalar_select %p201, %s17, 1
        %p203 = scmp.lt.s32.totalorder %s200, 1
        %s204 = scalar_select %p203, %s200, 1
        %s205 = smul.addr %s202, 4
        %s206 = sadd.s32 %s204, %s205
        %s207 = smul.addr %s206, 8
        %s208 = scalar_lea.vmem %s0, %s207
        %s209 = sadd.s32 %s18, %s19
        %s210 = smul.u32 2, %s209
      $region20: #{body_loss_cri.1} parent=15 // pred_fallthru
        _
      // Predicated region
      $region21: #{body_loss_cri.1} parent=15 // pred_check
        %p211 = pneg %p83
      $region22: #{body_loss_cri.1} parent=15 // pred_check_branch
        %213 = sbr.rel (%p211) target = $region24
      $region23: #{body_loss_cri.1} parent=15 // pred_region
        %s214 = sadd.s32 %s18, %s19
        %s215 = smul.u32 2, %s214
        %p216 = scmp.lt.s32.totalorder %s17, 1
        %s217 = scalar_select %p216, %s17, 1
        %p218 = scmp.lt.s32.totalorder %s215, 1
        %s219 = scalar_select %p218, %s215, 1
        %s220 = smul.addr %s217, 2
        %s221 = sadd.s32 %s219, %s220
        %s222 = scalar_lea.vmem %s1, %s221
        %s223 = sadd.s32 %s18, %s19
        %s224 = smul.u32 2, %s223
      $region24: #{body_loss_cri.1} parent=15 // pred_fallthru
        _
      // Predicated region
      $region25: #{body_loss_cri.1} parent=15 // pred_check
        %p225 = pneg %p113
      $region26: #{body_loss_cri.1} parent=15 // pred_check_branch
        %227 = sbr.rel (%p225) target = $region28
      $region27: #{body_loss_cri.1} parent=15 // pred_region
        %s228 = sadd.s32 %s18, %s19
        %s229 = smul.u32 2, %s228
        %p230 = scmp.lt.s32.totalorder %s17, 1
        %s231 = scalar_select %p230, %s17, 1
        %p232 = scmp.lt.s32.totalorder %s229, 1
        %s233 = scalar_select %p232, %s229, 1
        %s234 = smul.addr %s231, 2
        %s235 = sadd.s32 %s233, %s234
        %s236 = scalar_lea.vmem %s2, %s235
        %s237 = sadd.s32 %s18, %s19
        %s238 = smul.u32 2, %s237
      $region28: #{body_loss_cri.1} parent=15 // pred_fallthru
        _
      // Predicated region
      $region29: #{body_loss_cri.1} parent=15 // pred_check
        %p239 = pneg %p143
      $region30: #{body_loss_cri.1} parent=15 // pred_check_branch
        %241 = sbr.rel (%p239) target = $region32
      $region31: #{body_loss_cri.1} parent=15 // pred_region
        %s242 = sadd.s32 %s18, %s19
        %s243 = smul.u32 2, %s242
        %p244 = scmp.lt.s32.totalorder %s17, 1
        %s245 = scalar_select %p244, %s17, 1
        %p246 = scmp.lt.s32.totalorder %s243, 1
        %s247 = scalar_select %p246, %s243, 1
        %s248 = smul.addr %s245, 2
        %s249 = sadd.s32 %s247, %s248
        %s250 = scalar_lea.vmem %s3, %s249
        %s251 = sadd.s32 %s18, %s19
        %s252 = smul.u32 2, %s251
      $region32: #{body_loss_cri.1} parent=15 // pred_fallthru
        _
    $region16: #{body_loss_cri.1} parent=5 // pred_fallthru
      _
    %p253 = scmp.le.s32.totalorder 1, %s10
    %p254 = scmp.lt.s32.totalorder %s10, 3
    %p255 = pnand %p253, %p254
    %p256 = pneg %p255
    // Predicated region
    $region33: #{body_loss_cri.1} parent=5 // pred_check
      _
    $region34: #{body_loss_cri.1} parent=5 // pred_check_branch
      %258 = sbr.rel (%p255) target = $region36
    $region35: #{body_loss_cri.1} parent=5 // pred_region
      %s259 = ssub.s32 %s10, 1
      %s260 = sadd.s32 %s21, %s22
      %s261 = smul.u32 2, %s260
      %p262 = scmp.lt.s32.totalorder %s20, 1
      %s263 = scalar_select %p262, %s20, 1
      %p264 = scmp.lt.s32.totalorder %s261, 1
      %s265 = scalar_select %p264, %s261, 1
      %s266 = smul.addr %s263, 4
      %s267 = sadd.s32 %s265, %s266
      %s268 = smul.addr %s267, 8
      %s269 = scalar_lea.vmem %s0, %s268
      %p270 = pneg %p59
      %p271 = pneg %p56
      %s272 = sadd.s32 %s21, %s22
      %s273 = smul.u32 2, %s272
      %p274 = scmp.lt.s32.totalorder %s20, 1
      %s275 = scalar_select %p274, %s20, 1
      %p276 = scmp.lt.s32.totalorder %s273, 1
      %s277 = scalar_select %p276, %s273, 1
      %s278 = smul.addr %s275, 2
      %s279 = sadd.s32 %s277, %s278
      %s280 = scalar_lea.vmem %s1, %s279
      %p281 = pneg %p89
      %p282 = pneg %p86
      %s283 = sadd.s32 %s21, %s22
      %s284 = smul.u32 2, %s283
      %p285 = scmp.lt.s32.totalorder %s20, 1
      %s286 = scalar_select %p285, %s20, 1
      %p287 = scmp.lt.s32.totalorder %s284, 1
      %s288 = scalar_select %p287, %s284, 1
      %s289 = smul.addr %s286, 2
      %s290 = sadd.s32 %s288, %s289
      %s291 = scalar_lea.vmem %s2, %s290
      %p292 = pneg %p119
      %p293 = pneg %p116
      %s294 = sadd.s32 %s21, %s22
      %s295 = smul.u32 2, %s294
      %p296 = scmp.lt.s32.totalorder %s20, 1
      %s297 = scalar_select %p296, %s20, 1
      %p298 = scmp.lt.s32.totalorder %s295, 1
      %s299 = scalar_select %p298, %s295, 1
      %s300 = smul.addr %s297, 2
      %s301 = sadd.s32 %s299, %s300
      %s302 = scalar_lea.vmem %s3, %s301
      %p303 = pneg %p149
      %p304 = pneg %p146
      %p305 = pneg %p177
      %p306 = pneg %p174
      %s307 = sadd.s32 %s20, %s21
      %p308 = scmp.lt.s32.totalorder %s307, 1
      %s309 = scalar_select %p308, %s307, 1
      %s310 = scalar_lea.vmem %s4, %s309
      %s311 = sadd.s32 %s21, %s22
      %s312 = smul.u32 2, %s311
      %p313 = scmp.lt.s32.totalorder %s20, 1
      %s314 = scalar_select %p313, %s20, 1
      %p315 = scmp.lt.s32.totalorder %s312, 1
      %s316 = scalar_select %p315, %s312, 1
      %s317 = smul.addr %s314, 4
      %s318 = sadd.s32 %s316, %s317
      %s319 = smul.addr %s318, 8
      %s320 = scalar_lea.vmem %s0, %s319
      %s321 = sadd.s32 %s21, %s22
      %s322 = smul.u32 2, %s321
      %s323 = sadd.s32 %s21, %s22
      %s324 = smul.u32 2, %s323
      %p325 = scmp.lt.s32.totalorder %s20, 1
      %s326 = scalar_select %p325, %s20, 1
      %p327 = scmp.lt.s32.totalorder %s324, 1
      %s328 = scalar_select %p327, %s324, 1
      %s329 = smul.addr %s326, 2
      %s330 = sadd.s32 %s328, %s329
      %s331 = scalar_lea.vmem %s1, %s330
      %s332 = sadd.s32 %s21, %s22
      %s333 = smul.u32 2, %s332
      %s334 = sadd.s32 %s21, %s22
      %s335 = smul.u32 2, %s334
      %p336 = scmp.lt.s32.totalorder %s20, 1
      %s337 = scalar_select %p336, %s20, 1
      %p338 = scmp.lt.s32.totalorder %s335, 1
      %s339 = scalar_select %p338, %s335, 1
      %s340 = smul.addr %s337, 2
      %s341 = sadd.s32 %s339, %s340
      %s342 = scalar_lea.vmem %s2, %s341
      %s343 = sadd.s32 %s21, %s22
      %s344 = smul.u32 2, %s343
      %s345 = sadd.s32 %s21, %s22
      %s346 = smul.u32 2, %s345
      %p347 = scmp.lt.s32.totalorder %s20, 1
      %s348 = scalar_select %p347, %s20, 1
      %p349 = scmp.lt.s32.totalorder %s346, 1
      %s350 = scalar_select %p349, %s346, 1
      %s351 = smul.addr %s348, 2
      %s352 = sadd.s32 %s350, %s351
      %s353 = scalar_lea.vmem %s3, %s352
      %s354 = sadd.s32 %s21, %s22
      %s355 = smul.u32 2, %s354
      %s356 = sadd.s32 %s20, %s21
      %p357 = scmp.lt.s32.totalorder %s356, 1
      %s358 = scalar_select %p357, %s356, 1
      %s359 = scalar_lea.vmem %s4, %s358
      %s360 = sadd.s32 %s20, %s21
      %p361 = scmp.eq.s32.totalorder %s22, 0
      // Predicated region
      $region37: #{body_loss_cri.1} parent=35 // pred_check
        %p362 = pneg %p361
      $region38: #{body_loss_cri.1} parent=35 // pred_check_branch
        %364 = sbr.rel (%p362) target = $region40
      $region39: #{body_loss_cri.1} parent=35 // pred_region
        %v365 = vlaneseq
        %vm366 = vcmp.ge.s32.totalorder %v365, 0
        %vm367 = vcmp.lt.s32.totalorder %v365, 256
        %vm368 = vmand %vm366, %vm367
        %369 = vst.msk [vmem:[#allocation2] sm:$0x3] %vm368, 0.0
        %370 = vst.msk [vmem:[#allocation3] sm:$0x3] %vm368, 0.0
      $region40: #{body_loss_cri.1} parent=35 // pred_fallthru
        _
      %v371 = vld [vmem:[%s320] sm:$0xff]
      %v372 = vld [vmem:[%s320 + $0x8] sm:$0xff]
      %v373 = vld [vmem:[%s320 + $0x10] sm:$0xf]
      %v374 = vld [vmem:[%s320 + $0x18] sm:$0xf]
      %v375 = vld [vmem:[%s331] sm:$0x3]
      %v376 = vld [vmem:[%s342] sm:$0x3]
      %v377 = vld [vmem:[%s353] sm:$0x3]
      %vm378 = vcmp.eq.s32.totalorder %v377, 0
      %vm379 = vcmp.ne.s32.totalorder %v376, 0
      %vm380 = vmand %vm378, %vm379
      %vm381 = vcmask 1043456
      %v382 = vsel %vm381, %v373, -inf
      %v383 = vmax.f32 %v371, %v382
      %v384 = vrot.slane %v383, 4
      %v385 = vmax.f32 %v383, %v384
      %v386 = vrot.slane %v385, 2
      %v387 = vmax.f32 %v385, %v386
      %v388 = vrot.slane %v387, 1
      %v389 = vmax.f32 %v387, %v388
      %v390 = vsel %vm381, %v374, -inf
      %v391 = vmax.f32 %v372, %v390
      %v392 = vrot.slane %v391, 4
      %v393 = vmax.f32 %v391, %v392
      %v394 = vrot.slane %v393, 2
      %v395 = vmax.f32 %v393, %v394
      %v396 = vrot.slane %v395, 1
      %v397 = vmax.f32 %v395, %v396
      %v398 = vsub.f32 %v371, %v389
      %v399 = vsub.f32 %v372, %v397
      %v400 = vsub.f32 %v373, %v389
      %v401 = vsub.f32 %v374, %v397
      %v402 = vmul.f32 %v398, 1.442695
      %v403 = vpow.pop %v402
      %v404 = vmul.f32 %v399, 1.442695
      %v405 = vpow.pop %v404
      %v406 = vmul.f32 %v400, 1.442695
      %v407 = vpow.pop %v406
      %v408 = vmul.f32 %v401, 1.442695
      %v409 = vpow.pop %v408
      %v410 = vsel %vm381, %v407, 0.0
      %v411 = vadd.f32 %v403, %v410
      %v412 = vrot.slane %v411, 4
      %v413 = vadd.f32 %v411, %v412
      %v414 = vrot.slane %v413, 2
      %v415 = vadd.f32 %v413, %v414
      %v416 = vrot.slane %v415, 1
      %v417 = vadd.f32 %v415, %v416
      %v418 = vsel %vm381, %v409, 0.0
      %v419 = vadd.f32 %v405, %v418
      %v420 = vrot.slane %v419, 4
      %v421 = vadd.f32 %v419, %v420
      %v422 = vrot.slane %v421, 2
      %v423 = vadd.f32 %v421, %v422
      %v424 = vrot.slane %v423, 1
      %v425 = vadd.f32 %v423, %v424
      %v426 = vlog2.pop %v417
      %v427 = vmul.f32 %v426, 0.6931472
      %v428 = vlog2.pop %v425
      %v429 = vmul.f32 %v428, 0.6931472
      %v430 = vlaneseq
      %v431 = vshrl.u32 %v430, 7
      %v432 = vadd.s32 %v431, 8
      %v433 = vlaneseq
      %v434 = vshrl.u32 %v433, 7
      %v435 = vsub.s32 0, %v434
      %v436 = vrot.slane %v375, %v435
      %v437 = vlaneseq
      %v438 = vshrl.u32 %v437, 7
      %v439 = vsub.s32 1, %v438
      %v440 = vrot.slane %v375, %v439
      %vm441 = vcmp.eq.s32.totalorder %v431, %v436
      %vm442 = vcmp.eq.s32.totalorder %v431, %v440
      %vm443 = vcmp.eq.s32.totalorder %v432, %v436
      %vm444 = vcmp.eq.s32.totalorder %v432, %v440
      %v445 = vsel %vm441, %v398, 0.0
      %v446 = vsel %vm442, %v399, 0.0
      %v447 = vsel %vm443, %v400, 0.0
      %v448 = vsel %vm444, %v401, 0.0
      %v449 = vsel %vm381, %v447, 0.0
      %v450 = vadd.f32 %v445, %v449
      %v451 = vrot.slane %v450, 4
      %v452 = vadd.f32 %v450, %v451
      %v453 = vrot.slane %v452, 2
      %v454 = vadd.f32 %v452, %v453
      %v455 = vrot.slane %v454, 1
      %v456 = vadd.f32 %v454, %v455
      %v457 = vsel %vm381, %v448, 0.0
      %v458 = vadd.f32 %v446, %v457
      %v459 = vrot.slane %v458, 4
      %v460 = vadd.f32 %v458, %v459
      %v461 = vrot.slane %v460, 2
      %v462 = vadd.f32 %v460, %v461
      %v463 = vrot.slane %v462, 1
      %v464 = vadd.f32 %v462, %v463
      %v465 = vsub.f32 %v427, %v456
      %v466 = vsub.f32 %v429, %v464
      %vm467 = vcmp.ne.s32.totalorder %v375, 255
      %vm468 = vmand %vm380, %vm467
      %v471 = vcombine.low %v465, %v466
      %v473 = vunpack.c.l.s4 1966171168
      %v474 = vunpack.c.0.s8 %v473
      %v475 = vlaneseq
      %v476 = vshrl.u32 %v475, 7
      %v477 = vsub.s32 %v474, %v476
      %v478 = vrot.slane %v471, %v477
      %v480 = vunpack.c.l.s4 1966171168
      %v481 = vunpack.c.0.s8 %v480
      %v482 = vlaneseq
      %v483 = vshrl.u32 %v482, 7
      %v484 = vsub.s32 %v481, %v483
      %v485 = vrot.slane %v478, %v484
      %v487 = vsel %vm468, %v485, 0.0
      %v488 = vadd.f32 %v487, 0.0
      %v489 = vsel %vm380, 1.0, 0.0
      %v490 = vadd.f32 %v489, 0.0
      %v491 = vld [vmem:[#allocation2] sm:$0x3]
      %v492 = vadd.f32 %v491, %v488
      %v493 = vlaneseq
      %vm494 = vcmp.ge.s32.totalorder %v493, 0
      %vm495 = vcmp.lt.s32.totalorder %v493, 256
      %vm496 = vmand %vm494, %vm495
      %497 = vst.msk [vmem:[#allocation2] sm:$0x3] %vm496, %v492
      %v498 = vld [vmem:[#allocation3] sm:$0x3]
      %v499 = vadd.f32 %v498, %v490
      %500 = vst.msk [vmem:[#allocation3] sm:$0x3] %vm496, %v499
      // Predicated region
      $region41: #{body_loss_cri.1} parent=35 // pred_check
        %p501 = pneg %p361
      $region42: #{body_loss_cri.1} parent=35 // pred_check_branch
        %503 = sbr.rel (%p501) target = $region44
      $region43: #{body_loss_cri.1} parent=35 // pred_region
        %v504 = vld [vmem:[#allocation2] sm:$0x3]
        %v506 = vlaneseq
        %v507 = vshrl.u32 %v506, 7
        %v508 = vsub.s32 0, %v507
        %v509 = vrot.slane %v504, %v508
        %v510 = vlaneseq
        %v511 = vshrl.u32 %v510, 7
        %v512 = vsub.s32 1, %v511
        %v513 = vrot.slane %v504, %v512
        %vm516 = vcmask 1040384
        %v517 = vsel %vm516, %v509, 0.0
        %v518 = vsel %vm516, %v513, 0.0
        %v519 = vadd.f32 %v517, %v518
        %520 = vadd.xlane.f32.xlu0 %v519
        %v521 = vpop.xlane.xlu0 %520
        %v522 = vrot.slane %v521, 4
        %v523 = vadd.f32 %v521, %v522
        %v524 = vrot.slane %v523, 2
        %v525 = vadd.f32 %v523, %v524
        %v526 = vrot.slane %v525, 1
        %v527 = vadd.f32 %v525, %v526
        %s528 = vtos %v527
        %v529 = vld [vmem:[#allocation3] sm:$0x3]
        %v531 = vlaneseq
        %v532 = vshrl.u32 %v531, 7
        %v533 = vsub.s32 0, %v532
        %v534 = vrot.slane %v529, %v533
        %v535 = vlaneseq
        %v536 = vshrl.u32 %v535, 7
        %v537 = vsub.s32 1, %v536
        %v538 = vrot.slane %v529, %v537
        %v541 = vsel %vm516, %v534, 0.0
        %v542 = vsel %vm516, %v538, 0.0
        %v543 = vadd.f32 %v541, %v542
        %544 = vadd.xlane.f32.xlu0 %v543
        %v545 = vpop.xlane.xlu0 %544
        %v546 = vrot.slane %v545, 4
        %v547 = vadd.f32 %v545, %v546
        %v548 = vrot.slane %v547, 2
        %v549 = vadd.f32 %v547, %v548
        %v550 = vrot.slane %v549, 1
        %v551 = vadd.f32 %v549, %v550
        %s552 = vtos %v551
        %v553 = vlaneseq
        %v554 = vand.u32 %v553, 127
        %vm555 = vcmp.eq.s32.totalorder %v554, 0
        %vm556 = vcmp.eq.s32.totalorder %v554, 1
        %v557 = vstv %s552
        %v558 = vsel %vm556, %v557, 0.0
        %v559 = vstv %s528
        %v560 = vsel %vm555, %v559, %v558
        %561 = vst [vmem:[%s359] sm:$0x1] %v560
      $region44: #{body_loss_cri.1} parent=35 // pred_fallthru
        _
      %s562 = sadd.s32 %s20, %s21
      %p563 = scmp.lt.s32.totalorder %s562, 1
      %s564 = scalar_select %p563, %s562, 1
      %s565 = scalar_lea.vmem %s4, %s564
      // Predicated region
      $region45: #{body_loss_cri.1} parent=35 // pred_check
        %p566 = pneg %p174
      $region46: #{body_loss_cri.1} parent=35 // pred_check_branch
        %568 = sbr.rel (%p566) target = $region48
      $region47: #{body_loss_cri.1} parent=35 // pred_region
        %s569 = sadd.s32 %s20, %s21
      $region48: #{body_loss_cri.1} parent=35 // pred_fallthru
        _
    $region36: #{body_loss_cri.1} parent=5 // pred_fallthru
      _
    %p570 = scmp.le.s32.totalorder 2, %s10
    // Predicated region
    $region49: #{body_loss_cri.1} parent=5 // pred_check
      %p571 = pneg %p570
    $region50: #{body_loss_cri.1} parent=5 // pred_check_branch
      %573 = sbr.rel (%p571) target = $region52
    $region51: #{body_loss_cri.1} parent=5 // pred_region
      %s574 = ssub.s32 %s10, 2
      // Predicated region
      $region53: #{body_loss_cri.1} parent=51 // pred_check
        %p575 = pneg %p180
      $region54: #{body_loss_cri.1} parent=51 // pred_check_branch
        %577 = sbr.rel (%p575) target = $region56
      $region55: #{body_loss_cri.1} parent=51 // pred_region
        %s578 = sadd.s32 %s23, %s24
        %p579 = scmp.lt.s32.totalorder %s578, 1
        %s580 = scalar_select %p579, %s578, 1
        %s581 = scalar_lea.vmem %s4, %s580
      $region56: #{body_loss_cri.1} parent=51 // pred_fallthru
        _
    $region52: #{body_loss_cri.1} parent=5 // pred_fallthru
      _
  $region6: #{body_loss_cri.1} parent=0 // loop_footer
    %s14 = sadd.s32 1, %s10
  $region7: #{body_loss_cri.1} parent=0 // loop_footer_branch
    %9 = sbr.rel target = $region3
  $region8: #{body_loss_cri.1} parent=0 // loop_exit
    _

</llo_original>
